<compile_context>
chip_gen: v7x
topology: tpu7x:2x2x1
jax: 0.10.0
libtpu: 0.0.40
codegen_flags: <defaults>
</compile_context>

<pallas_src>
import functools

import jax
import jax.numpy as jnp
from jax.experimental import pallas as pl
from jax.experimental.pallas import tpu as pltpu

# ----- label-space sizes implied by the module's __init__ -----------------
F_CLS = 28   # len(emotions.txt)             -> self.fclsNum
E_CLS = 7    # ekman_mapping + 'neutral'     -> self.eclsNum
S_CLS = 4    # sentiment_mapping + 'neutral' -> self.sclsNum

LANES = 128                      # lane-dense packed output width
F_OFF, E_OFF, S_OFF = 0, 32, 64  # lane offsets of the three logit groups
NEG = -1e9                       # pad bias value (NOT -inf: 0*-inf = NaN)

VMEM_BUDGET = 48 * 1024 * 1024   # conservative vs v7x's 64 MiB per-TC VMEM


def _cdiv(a, b):
    return -(-a // b)


def _round_up(n, m):
    return _cdiv(n, m) * m


# ---------------------------------------------------------------------------
# Pallas kernel: classification head hot path on CLS rows only.
#   fpred = x @ Wf + bf
#   epred = (softmax(fpred) if soft else fpred) @ We + be
#   spred = (softmax(epred) if soft else epred) @ Ws + bs
# All class axes are pre-padded to 128 lanes; padded bias lanes are -1e9 so the
# 128-lane softmax equals the true 28/7-lane softmax.  We/Ws columns (and their
# biases) are placed at lane offsets 32/64 so the three results pack into one
# lane-dense slab with a single full-width store.
# ---------------------------------------------------------------------------
def _softmax_last(x):
    m = jnp.max(x, axis=-1, keepdims=True)
    e = jnp.exp(x - m)
    # approx=False: this softmax feeds the *returned* epred/spred logits and
    # the kernel is DMA-bound, so the exact reciprocal is effectively free.
    return e * pl.reciprocal(jnp.sum(e, axis=-1, keepdims=True), approx=False)


def emo_head_kernel(x_ref, wf_ref, bf_ref, we_ref, be_ref, ws_ref, bs_ref,
                    out_ref, *, soft):
    # x arrives f32; cast to bf16 on the VPU (hidden under DMA).  MXU
    # accumulates in f32; bias adds stay in f32.
    x = x_ref[...].astype(jnp.bfloat16)

    fpred = jnp.dot(x, wf_ref[...],
                    preferred_element_type=jnp.float32) + bf_ref[...]
    f_in = _softmax_last(fpred) if soft else fpred

    epred = jnp.dot(f_in.astype(jnp.bfloat16), we_ref[...],
                    preferred_element_type=jnp.float32) + be_ref[...]
    e_in = _softmax_last(epred) if soft else epred

    spred = jnp.dot(e_in.astype(jnp.bfloat16), ws_ref[...],
                    preferred_element_type=jnp.float32) + bs_ref[...]

    # Pack the three logit groups into a single lane-dense slab:
    #   lanes [0,32)  -> fpred (real lanes 0..27)
    #   lanes [32,64) -> epred (real lanes 32..38, positioned by We/be padding)
    #   lanes [64,..) -> spred (real lanes 64..67, positioned by Ws/bs padding)
    lane = jax.lax.broadcasted_iota(jnp.int32, fpred.shape, 1)
    out_ref[...] = jnp.where(lane < E_OFF, fpred,
                             jnp.where(lane < S_OFF, epred, spred))


def _pad_head_params(params):
    """Pad class axes to 128 lanes once, outside the kernel.

    We/Ws real columns (and be/bs real lanes) are placed at lane offsets
    E_OFF / S_OFF so the kernel can pack all three results into one slab.
    Padded weight rows are exactly zero and padded bias lanes are -1e9
    (finite!), which keeps both the soft=True softmaxes and the soft=False
    chained matmuls NaN-free and equal to the unpadded math.
    """
    H = params["wf"].shape[0]

    wf = jnp.zeros((H, LANES), jnp.bfloat16)
    wf = wf.at[:, F_OFF:F_OFF + F_CLS].set(params["wf"].astype(jnp.bfloat16))
    bf = jnp.full((1, LANES), NEG, jnp.float32)
    bf = bf.at[:, F_OFF:F_OFF + F_CLS].set(params["bf"])

    we = jnp.zeros((LANES, LANES), jnp.bfloat16)
    we = we.at[F_OFF:F_OFF + F_CLS,
               E_OFF:E_OFF + E_CLS].set(params["we"].astype(jnp.bfloat16))
    be = jnp.full((1, LANES), NEG, jnp.float32)
    be = be.at[:, E_OFF:E_OFF + E_CLS].set(params["be"])

    ws = jnp.zeros((LANES, LANES), jnp.bfloat16)
    ws = ws.at[E_OFF:E_OFF + E_CLS,
               S_OFF:S_OFF + S_CLS].set(params["ws"].astype(jnp.bfloat16))
    bs = jnp.full((1, LANES), NEG, jnp.float32)
    bs = bs.at[:, S_OFF:S_OFF + S_CLS].set(params["bs"])

    return wf, bf, we, be, ws, bs


def _vmem_bytes(tile, H):
    """Double-buffered VMEM estimate for one grid step."""
    x_buf = 2 * tile * H * 4                                  # f32 CLS rows
    out_buf = 2 * tile * LANES * 4                            # packed f32 out
    w_buf = 2 * (H * LANES * 2 + 2 * LANES * LANES * 2 + 3 * LANES * 4)
    return x_buf + out_buf + w_buf


def _choose_tiling(B, H, max_tile_rows):
    """Row tile that minimizes padded rows, prefers >=2 grid steps (v7x has
    two TensorCores) and respects the VMEM budget."""
    n_steps = max(1, _cdiv(B, max_tile_rows))
    if n_steps == 1 and B >= 16:
        n_steps = 2                     # let "parallel" use both v7x cores
    tile = _round_up(_cdiv(B, n_steps), 8)
    while tile > 8 and _vmem_bytes(tile, H) > VMEM_BUDGET:
        n_steps += 1
        tile = _round_up(_cdiv(B, n_steps), 8)
    return tile, n_steps


def emo_head(cls_hidden, params, *, soft, max_tile_rows=512):
    """cls_hidden: (B, H) f32 CLS rows -> (fcls, ecls, scls) = (B,28),(B,7),(B,4)."""
    B, H = cls_hidden.shape
    tile, n_steps = _choose_tiling(B, H, max_tile_rows)
    rows = tile * n_steps

    x = cls_hidden                       # stays f32; kernel casts to bf16
    if rows != B:
        x = jnp.pad(x, ((0, rows - B), (0, 0)))

    wf, bf, we, be, ws, bs = _pad_head_params(params)

    vmem_limit = int(max(32 * 1024 * 1024,
                         min(VMEM_BUDGET, _vmem_bytes(tile, H))
                         + 2 * 1024 * 1024))

    full2 = lambda shape: pl.BlockSpec(shape, lambda i: (0, 0))

    packed = pl.pallas_call(
        functools.partial(emo_head_kernel, soft=soft),
        out_shape=jax.ShapeDtypeStruct((rows, LANES), jnp.float32),
        grid_spec=pltpu.PrefetchScalarGridSpec(
            num_scalar_prefetch=0,
            grid=(n_steps,),
            in_specs=[
                pl.BlockSpec((tile, H), lambda i: (i, 0)),        # CLS rows
                full2((H, LANES)), full2((1, LANES)),             # Wf, bf
                full2((LANES, LANES)), full2((1, LANES)),         # We, be
                full2((LANES, LANES)), full2((1, LANES)),         # Ws, bs
            ],
            out_specs=pl.BlockSpec((tile, LANES), lambda i: (i, 0)),
        ),
        compiler_params=pltpu.CompilerParams(
            dimension_semantics=("parallel",),
            vmem_limit_bytes=vmem_limit,
        ),
    )(x, wf, bf, we, be, ws, bs)

    # Slice away row padding and unpack the three logit groups.
    return (packed[:B, F_OFF:F_OFF + F_CLS],
            packed[:B, E_OFF:E_OFF + E_CLS],
            packed[:B, S_OFF:S_OFF + S_CLS])


# ---------------------------------------------------------------------------
# Deterministic synthetic BERT-like backbone (plain JAX glue).
# TODO(synk): stands in for BertModel.from_pretrained(...)['last_hidden_state'].
# ---------------------------------------------------------------------------
def init_backbone(key, vocab, max_len, hidden):
    ks = jax.random.split(key, 8)
    s = 0.02
    return {
        "tok_emb": s * jax.random.normal(ks[0], (vocab, hidden), jnp.float32),
        "pos_emb": s * jax.random.normal(ks[1], (max_len, hidden), jnp.float32),
        "wq": s * jax.random.normal(ks[2], (hidden, hidden), jnp.float32),
        "wk": s * jax.random.normal(ks[3], (hidden, hidden), jnp.float32),
        "wv": s * jax.random.normal(ks[4], (hidden, hidden), jnp.float32),
        "wo": s * jax.random.normal(ks[5], (hidden, hidden), jnp.float32),
        "w1": s * jax.random.normal(ks[6], (hidden, 4 * hidden), jnp.float32),
        "w2": s * jax.random.normal(ks[7], (4 * hidden, hidden), jnp.float32),
    }


def layer_norm(x, eps=1e-12):
    mu = jnp.mean(x, axis=-1, keepdims=True)
    var = jnp.mean((x - mu) ** 2, axis=-1, keepdims=True)
    return (x - mu) * jax.lax.rsqrt(var + eps)


def backbone_forward(p, input_ids, attention_mask):
    B, S = input_ids.shape
    H = p["tok_emb"].shape[1]
    h = p["tok_emb"][input_ids] + p["pos_emb"][None, :S, :]
    h = layer_norm(h)
    # single-head self-attention with padding mask
    q = h @ p["wq"]; k = h @ p["wk"]; v = h @ p["wv"]
    scores = jnp.einsum("bqd,bkd->bqk", q, k) / jnp.sqrt(jnp.float32(H))
    bias = (1.0 - attention_mask.astype(jnp.float32))[:, None, :] * -1e9
    attn = jax.nn.softmax(scores + bias, axis=-1)
    h = layer_norm(h + jnp.einsum("bqk,bkd->bqd", attn, v) @ p["wo"])
    h = layer_norm(h + jax.nn.gelu(h @ p["w1"]) @ p["w2"])
    return h  # (B, S, H) == 'last_hidden_state'


def init_head(key, hidden):
    ks = jax.random.split(key, 6)
    s = 0.05
    return {
        "wf": s * jax.random.normal(ks[0], (hidden, F_CLS), jnp.float32),
        "bf": s * jax.random.normal(ks[1], (1, F_CLS), jnp.float32),
        "we": s * jax.random.normal(ks[2], (F_CLS, E_CLS), jnp.float32),
        "be": s * jax.random.normal(ks[3], (1, E_CLS), jnp.float32),
        "ws": s * jax.random.normal(ks[4], (E_CLS, S_CLS), jnp.float32),
        "bs": s * jax.random.normal(ks[5], (1, S_CLS), jnp.float32),
    }


def emo_model_forward(backbone_params, head_params, input_ids, attention_mask,
                      *, soft=True):
    hidden = backbone_forward(backbone_params, input_ids, attention_mask)
    # The head is position-wise and the module only returns position-0 logits,
    # so only the CLS row needs to enter the kernel.
    cls_hidden = hidden[:, 0, :]
    return emo_head(cls_hidden, head_params, soft=soft)


if __name__ == "__main__":
    B, S, H, VOCAB = 2, 8, 32, 64
    key = jax.random.PRNGKey(0)
    k_bb, k_head, k_ids = jax.random.split(key, 3)

    backbone_params = init_backbone(k_bb, VOCAB, S, H)
    head_params = init_head(k_head, H)

    input_ids = jax.random.randint(k_ids, (B, S), 0, VOCAB, dtype=jnp.int32)
    attention_mask = jnp.ones((B, S), dtype=jnp.int32)
    attention_mask = attention_mask.at[1, 6:].set(0)  # pad tail of sequence 1

    # Exercise both the soft=True and soft=False paths of the head kernel.
    fcls, ecls, scls = emo_model_forward(
        backbone_params, head_params, input_ids, attention_mask, soft=True)
    fcls2, ecls2, scls2 = emo_model_forward(
        backbone_params, head_params, input_ids, attention_mask, soft=False)
    jax.block_until_ready((fcls, ecls, scls, fcls2, ecls2, scls2))

    assert fcls.shape == (B, F_CLS)
    assert ecls.shape == (B, E_CLS)
    assert scls.shape == (B, S_CLS)
    for t in (fcls, ecls, scls, fcls2, ecls2, scls2):
        assert bool(jnp.all(jnp.isfinite(t)))
    print("KERNEL_OK")
</pallas_src>

<mosaic_0001>
module attributes {stable_mosaic.version = 11 : i64} {
  func.func @emo_head_kernel(%arg0: i32, %arg1: memref<8x32xf32, #tpu.memory_space<vmem>>, %arg2: memref<32x128xbf16, #tpu.memory_space<vmem>>, %arg3: memref<1x128xf32, #tpu.memory_space<vmem>>, %arg4: memref<128x128xbf16, #tpu.memory_space<vmem>>, %arg5: memref<1x128xf32, #tpu.memory_space<vmem>>, %arg6: memref<128x128xbf16, #tpu.memory_space<vmem>>, %arg7: memref<1x128xf32, #tpu.memory_space<vmem>>, %arg8: memref<8x128xf32, #tpu.memory_space<vmem>>) attributes {dimension_semantics = [#tpu.dimension_semantics<parallel>], iteration_bounds = array<i64: 1>, scalar_prefetch = 0 : i64, scratch_operands = 0 : i64, tpu.core_type = #tpu.core_type<tc>, window_params = [{transform_indices = @transform_0, window_bounds = array<i64: 8, 32>}, {pipeline_mode = #tpu.pipeline_mode<synchronous>, transform_indices = @transform_1, window_bounds = array<i64: 32, 128>}, {pipeline_mode = #tpu.pipeline_mode<synchronous>, transform_indices = @transform_2, window_bounds = array<i64: 1, 128>}, {pipeline_mode = #tpu.pipeline_mode<synchronous>, transform_indices = @transform_3, window_bounds = array<i64: 128, 128>}, {pipeline_mode = #tpu.pipeline_mode<synchronous>, transform_indices = @transform_4, window_bounds = array<i64: 1, 128>}, {pipeline_mode = #tpu.pipeline_mode<synchronous>, transform_indices = @transform_5, window_bounds = array<i64: 128, 128>}, {pipeline_mode = #tpu.pipeline_mode<synchronous>, transform_indices = @transform_6, window_bounds = array<i64: 1, 128>}, {transform_indices = @transform_7, window_bounds = array<i64: 8, 128>}]} {
    %c0 = arith.constant 0 : index
    %c0_0 = arith.constant 0 : index
    %0 = vector.load %arg1[%c0, %c0_0] : memref<8x32xf32, #tpu.memory_space<vmem>>, vector<8x32xf32>
    %1 = arith.truncf %0 : vector<8x32xf32> to vector<8x32xbf16>
    %c0_1 = arith.constant 0 : index
    %c0_2 = arith.constant 0 : index
    %2 = vector.load %arg2[%c0_1, %c0_2] : memref<32x128xbf16, #tpu.memory_space<vmem>>, vector<32x128xbf16>
    %cst = arith.constant dense<0.000000e+00> : vector<8x128xf32>
    %3 = tpu.matmul %1, %2, %cst {dimension_numbers = #tpu.dot_dimension_numbers<[1], [0], [0], [1], [0, 0, 1, 1], [], []>} : vector<8x32xbf16>, vector<32x128xbf16>, vector<8x128xf32> -> vector<8x128xf32>
    %c0_3 = arith.constant 0 : index
    %c0_4 = arith.constant 0 : index
    %4 = vector.load %arg3[%c0_3, %c0_4] : memref<1x128xf32, #tpu.memory_space<vmem>>, vector<1x128xf32>
    %5 = vector.broadcast %4 : vector<1x128xf32> to vector<8x128xf32>
    %6 = arith.addf %3, %5 : vector<8x128xf32>
    %cst_5 = arith.constant dense<0xFF800000> : vector<8xf32>
    %7 = vector.multi_reduction <maximumf>, %6, %cst_5 [1] : vector<8x128xf32> to vector<8xf32>
    %8 = vector.shape_cast %7 : vector<8xf32> to vector<8x1xf32>
    %9 = vector.broadcast %8 : vector<8x1xf32> to vector<8x128xf32>
    %10 = arith.subf %6, %9 : vector<8x128xf32>
    %11 = math.exp %10 : vector<8x128xf32>
    %cst_6 = arith.constant dense<0.000000e+00> : vector<8xf32>
    %12 = vector.multi_reduction <add>, %11, %cst_6 [1] : vector<8x128xf32> to vector<8xf32>
    %13 = vector.shape_cast %12 : vector<8xf32> to vector<8x1xf32>
    %14 = tpu.reciprocal %13 : vector<8x1xf32> -> vector<8x1xf32>
    %15 = vector.broadcast %14 : vector<8x1xf32> to vector<8x128xf32>
    %16 = arith.mulf %11, %15 : vector<8x128xf32>
    %17 = arith.truncf %16 : vector<8x128xf32> to vector<8x128xbf16>
    %c0_7 = arith.constant 0 : index
    %c0_8 = arith.constant 0 : index
    %18 = vector.load %arg4[%c0_7, %c0_8] : memref<128x128xbf16, #tpu.memory_space<vmem>>, vector<128x128xbf16>
    %cst_9 = arith.constant dense<0.000000e+00> : vector<8x128xf32>
    %19 = tpu.matmul %17, %18, %cst_9 {dimension_numbers = #tpu.dot_dimension_numbers<[1], [0], [0], [1], [0, 0, 1, 1], [], []>} : vector<8x128xbf16>, vector<128x128xbf16>, vector<8x128xf32> -> vector<8x128xf32>
    %c0_10 = arith.constant 0 : index
    %c0_11 = arith.constant 0 : index
    %20 = vector.load %arg5[%c0_10, %c0_11] : memref<1x128xf32, #tpu.memory_space<vmem>>, vector<1x128xf32>
    %21 = vector.broadcast %20 : vector<1x128xf32> to vector<8x128xf32>
    %22 = arith.addf %19, %21 : vector<8x128xf32>
    %cst_12 = arith.constant dense<0xFF800000> : vector<8xf32>
    %23 = vector.multi_reduction <maximumf>, %22, %cst_12 [1] : vector<8x128xf32> to vector<8xf32>
    %24 = vector.shape_cast %23 : vector<8xf32> to vector<8x1xf32>
    %25 = vector.broadcast %24 : vector<8x1xf32> to vector<8x128xf32>
    %26 = arith.subf %22, %25 : vector<8x128xf32>
    %27 = math.exp %26 : vector<8x128xf32>
    %cst_13 = arith.constant dense<0.000000e+00> : vector<8xf32>
    %28 = vector.multi_reduction <add>, %27, %cst_13 [1] : vector<8x128xf32> to vector<8xf32>
    %29 = vector.shape_cast %28 : vector<8xf32> to vector<8x1xf32>
    %30 = tpu.reciprocal %29 : vector<8x1xf32> -> vector<8x1xf32>
    %31 = vector.broadcast %30 : vector<8x1xf32> to vector<8x128xf32>
    %32 = arith.mulf %27, %31 : vector<8x128xf32>
    %33 = arith.truncf %32 : vector<8x128xf32> to vector<8x128xbf16>
    %c0_14 = arith.constant 0 : index
    %c0_15 = arith.constant 0 : index
    %34 = vector.load %arg6[%c0_14, %c0_15] : memref<128x128xbf16, #tpu.memory_space<vmem>>, vector<128x128xbf16>
    %cst_16 = arith.constant dense<0.000000e+00> : vector<8x128xf32>
    %35 = tpu.matmul %33, %34, %cst_16 {dimension_numbers = #tpu.dot_dimension_numbers<[1], [0], [0], [1], [0, 0, 1, 1], [], []>} : vector<8x128xbf16>, vector<128x128xbf16>, vector<8x128xf32> -> vector<8x128xf32>
    %c0_17 = arith.constant 0 : index
    %c0_18 = arith.constant 0 : index
    %36 = vector.load %arg7[%c0_17, %c0_18] : memref<1x128xf32, #tpu.memory_space<vmem>>, vector<1x128xf32>
    %37 = vector.broadcast %36 : vector<1x128xf32> to vector<8x128xf32>
    %38 = arith.addf %35, %37 : vector<8x128xf32>
    %39 = tpu.iota {dimensions = array<i32: 1>} : vector<8x128xi32>
    %c32_i32 = arith.constant 32 : i32
    %40 = vector.broadcast %c32_i32 : i32 to vector<8x128xi32>
    %41 = arith.cmpi slt, %39, %40 : vector<8x128xi32>
    %c64_i32 = arith.constant 64 : i32
    %42 = vector.broadcast %c64_i32 : i32 to vector<8x128xi32>
    %43 = arith.cmpi slt, %39, %42 : vector<8x128xi32>
    %44 = arith.select %43, %22, %38 : vector<8x128xi1>, vector<8x128xf32>
    %45 = arith.select %41, %6, %44 : vector<8x128xi1>, vector<8x128xf32>
    %c0_19 = arith.constant 0 : index
    %c0_20 = arith.constant 0 : index
    %46 = vector.load %arg8[%c0_19, %c0_20] : memref<8x128xf32, #tpu.memory_space<vmem>>, vector<8x128xf32>
    tpu.vector_store %arg8[%c0_19, %c0_20], %45 {strides = array<i32>} : memref<8x128xf32, #tpu.memory_space<vmem>>, vector<8x128xf32>,
    return
  }
  func.func @transform_0(%arg0: i32) -> (i32, i32) {
    %c0_i32 = arith.constant 0 : i32
    %c0_i32_0 = arith.constant 0 : i32
    return %arg0, %c0_i32 : i32, i32
  }
  func.func @transform_1(%arg0: i32) -> (i32, i32) {
    %c0_i32 = arith.constant 0 : i32
    %c0_i32_0 = arith.constant 0 : i32
    %c0_i32_1 = arith.constant 0 : i32
    return %c0_i32, %c0_i32_0 : i32, i32
  }
  func.func @transform_2(%arg0: i32) -> (i32, i32) {
    %c0_i32 = arith.constant 0 : i32
    %c0_i32_0 = arith.constant 0 : i32
    %c0_i32_1 = arith.constant 0 : i32
    return %c0_i32, %c0_i32_0 : i32, i32
  }
  func.func @transform_3(%arg0: i32) -> (i32, i32) {
    %c0_i32 = arith.constant 0 : i32
    %c0_i32_0 = arith.constant 0 : i32
    %c0_i32_1 = arith.constant 0 : i32
    return %c0_i32, %c0_i32_0 : i32, i32
  }
  func.func @transform_4(%arg0: i32) -> (i32, i32) {
    %c0_i32 = arith.constant 0 : i32
    %c0_i32_0 = arith.constant 0 : i32
    %c0_i32_1 = arith.constant 0 : i32
    return %c0_i32, %c0_i32_0 : i32, i32
  }
  func.func @transform_5(%arg0: i32) -> (i32, i32) {
    %c0_i32 = arith.constant 0 : i32
    %c0_i32_0 = arith.constant 0 : i32
    %c0_i32_1 = arith.constant 0 : i32
    return %c0_i32, %c0_i32_0 : i32, i32
  }
  func.func @transform_6(%arg0: i32) -> (i32, i32) {
    %c0_i32 = arith.constant 0 : i32
    %c0_i32_0 = arith.constant 0 : i32
    %c0_i32_1 = arith.constant 0 : i32
    return %c0_i32, %c0_i32_0 : i32, i32
  }
  func.func @transform_7(%arg0: i32) -> (i32, i32) {
    %c0_i32 = arith.constant 0 : i32
    %c0_i32_0 = arith.constant 0 : i32
    return %arg0, %c0_i32 : i32, i32
  }
}

</mosaic_0001>

<llo_original>
// kernel: tpu_custom_call.1
$region0: #{tpu_custom_call.1}
  #allocation0 [shape = 'u32[]', space=smem, size = 0x4, offset = 0x4, fixed_abs, tag = 'smem constant byte address 0x4 - core index']
  #allocation1 [shape = 'u32[144,128]{1,0:T(1,128)}', space=vmem, size = 0x12000, scoped, tag = 'internal scratch']
  %s0 = inlined_call_operand.hbm [shape: f32[8,32], index: 0, kind: input, shape index: {}]
  %s1 = inlined_call_operand.hbm [shape: bf16[32,128], index: 1, kind: input, shape index: {}]
  %s2 = inlined_call_operand.vmem [shape: f32[1,128], index: 2, kind: input, shape index: {}]
  %s3 = inlined_call_operand.hbm [shape: bf16[128,128], index: 3, kind: input, shape index: {}]
  %s4 = inlined_call_operand.vmem [shape: f32[1,128], index: 4, kind: input, shape index: {}]
  %s5 = inlined_call_operand.hbm [shape: bf16[128,128], index: 5, kind: input, shape index: {}]
  %s6 = inlined_call_operand.vmem [shape: f32[1,128], index: 6, kind: input, shape index: {}]
  %s7 = inlined_call_operand.hbm [shape: f32[8,128], index: 7, kind: output, shape index: {}]
  %s8 = sld [smem:[#allocation0]]
  $region54: #{tpu_custom_call.1} parent=0
    _
  %s10 = ssub.s32 1, %s8
  %s11 = scalar_select 0, %s10, %s8
  $region1: #{tpu_custom_call.1} parent=0
    #allocation2 [shape = 'u8[4096]{0}', space=vmem, size = 0x1000, scoped, tag = 'input window, operand 0, single buffered']
    #allocation3 [shape = 's32[1]{0}', space=sflag, size = 0x4, scoped, tag = 'scoped memory for tpu_custom_call.1']
    #allocation4 [shape = 's32[1]{0}', space=sflag, size = 0x4, scoped, tag = 'scoped memory for tpu_custom_call.1']
    #allocation5 [shape = 'u8[8192]{0}', space=vmem, size = 0x2000, scoped, tag = 'input window, operand 1, single buffered']
    #allocation6 [shape = 's32[1]{0}', space=sflag, size = 0x4, scoped, tag = 'scoped memory for tpu_custom_call.1']
    #allocation7 [shape = 'u8[32768]{0}', space=vmem, size = 0x8000, scoped, tag = 'input window, operand 3, single buffered']
    #allocation8 [shape = 'u8[32768]{0}', space=vmem, size = 0x8000, scoped, tag = 'input window, operand 5, single buffered']
    #allocation9 [shape = 's32[1]{0}', space=sflag, size = 0x4, scoped, tag = 'scoped memory for tpu_custom_call.1']
    #allocation10 [shape = 'u8[4096]{0}', space=vmem, size = 0x1000, scoped, tag = 'output window, operand 0, single buffered']
    %12 = vsyncpa [#allocation3], 0
    %13 = vsyncpa [#allocation6], 0
    %14 = vsyncpa [#allocation9], 0
    %15 = vsyncpa [#allocation4], 0
    // Predicated region
    $region2: #{tpu_custom_call.1} parent=1 // pred_check
      _
    $region3: #{tpu_custom_call.1} parent=1 // pred_check_branch
      %17 = sbr.rel (0) target = $region5
    $region4: #{tpu_custom_call.1} parent=1 // pred_region
      %s19 = ssub.s32 128, 128
      %20 = vsyncadd [#allocation3], %s19
      %s22 = sshll.u32 [#allocation2], 4
      %s23 = int_to_ptr.vmem [resolvable:$true] %s22
      %25 = dma.hbm_to_vmem [thread:$0]  %s0, 128, %s23, [#allocation3]
    $region5: #{tpu_custom_call.1} parent=1 // pred_fallthru
      _
    // Predicated region
    $region6: #{tpu_custom_call.1} parent=1 // pred_check
      _
    $region7: #{tpu_custom_call.1} parent=1 // pred_check_branch
      %27 = sbr.rel (0) target = $region9
    $region8: #{tpu_custom_call.1} parent=1 // pred_region
      %s29 = ssub.s32 256, 256
      %30 = vsyncadd [#allocation6], %s29
      %s31 = sshll.u32 [#allocation5], 4
      %s32 = int_to_ptr.vmem [resolvable:$true] %s31
      %37 = dma.hbm_to_vmem [thread:$0]  %s1, 256, %s32, [#allocation6], 64, 64, 4
    $region9: #{tpu_custom_call.1} parent=1 // pred_fallthru
      _
    // Predicated region
    $region10: #{tpu_custom_call.1} parent=1 // pred_check
      _
    $region11: #{tpu_custom_call.1} parent=1 // pred_check_branch
      %39 = sbr.rel (0) target = $region13
    $region12: #{tpu_custom_call.1} parent=1 // pred_region
      _
    $region13: #{tpu_custom_call.1} parent=1 // pred_fallthru
      _
    // Predicated region
    $region14: #{tpu_custom_call.1} parent=1 // pred_check
      _
    $region15: #{tpu_custom_call.1} parent=1 // pred_check_branch
      %41 = sbr.rel (0) target = $region17
    $region16: #{tpu_custom_call.1} parent=1 // pred_region
      %s43 = ssub.s32 1024, 1024
      %44 = vsyncadd [#allocation6], %s43
      %s45 = sshll.u32 [#allocation7], 4
      %s46 = int_to_ptr.vmem [resolvable:$true] %s45
      %51 = dma.hbm_to_vmem [thread:$0]  %s3, 1024, %s46, [#allocation6], 64, 64, 4
    $region17: #{tpu_custom_call.1} parent=1 // pred_fallthru
      _
    // Predicated region
    $region18: #{tpu_custom_call.1} parent=1 // pred_check
      _
    $region19: #{tpu_custom_call.1} parent=1 // pred_check_branch
      %53 = sbr.rel (0) target = $region21
    $region20: #{tpu_custom_call.1} parent=1 // pred_region
      _
    $region21: #{tpu_custom_call.1} parent=1 // pred_fallthru
      _
    // Predicated region
    $region22: #{tpu_custom_call.1} parent=1 // pred_check
      _
    $region23: #{tpu_custom_call.1} parent=1 // pred_check_branch
      %55 = sbr.rel (0) target = $region25
    $region24: #{tpu_custom_call.1} parent=1 // pred_region
      %s57 = ssub.s32 1024, 1024
      %58 = vsyncadd [#allocation9], %s57
      %s59 = sshll.u32 [#allocation8], 4
      %s60 = int_to_ptr.vmem [resolvable:$true] %s59
      %65 = dma.hbm_to_vmem [thread:$0]  %s5, 1024, %s60, [#allocation9], 64, 64, 4
    $region25: #{tpu_custom_call.1} parent=1 // pred_fallthru
      _
    // Predicated region
    $region26: #{tpu_custom_call.1} parent=1 // pred_check
      _
    $region27: #{tpu_custom_call.1} parent=1 // pred_check_branch
      %67 = sbr.rel (0) target = $region29
    $region28: #{tpu_custom_call.1} parent=1 // pred_region
      _
    $region29: #{tpu_custom_call.1} parent=1 // pred_fallthru
      _
    // Predicated region
    $region30: #{tpu_custom_call.1} parent=1 // pred_check
      _
    $region31: #{tpu_custom_call.1} parent=1 // pred_check_branch
      %69 = sbr.rel (0) target = $region33
    $region32: #{tpu_custom_call.1} parent=1 // pred_region
      %70 = dma.done [#allocation3], 128
    $region33: #{tpu_custom_call.1} parent=1 // pred_fallthru
      _
    // Predicated region
    $region34: #{tpu_custom_call.1} parent=1 // pred_check
      _
    $region35: #{tpu_custom_call.1} parent=1 // pred_check_branch
      %72 = sbr.rel (0) target = $region37
    $region36: #{tpu_custom_call.1} parent=1 // pred_region
      %73 = dma.done [#allocation6], 256
    $region37: #{tpu_custom_call.1} parent=1 // pred_fallthru
      _
    // Predicated region
    $region38: #{tpu_custom_call.1} parent=1 // pred_check
      _
    $region39: #{tpu_custom_call.1} parent=1 // pred_check_branch
      %75 = sbr.rel (0) target = $region41
    $region40: #{tpu_custom_call.1} parent=1 // pred_region
      %76 = dma.done [#allocation6], 1024
    $region41: #{tpu_custom_call.1} parent=1 // pred_fallthru
      _
    // Predicated region
    $region42: #{tpu_custom_call.1} parent=1 // pred_check
      _
    $region43: #{tpu_custom_call.1} parent=1 // pred_check_branch
      %78 = sbr.rel (0) target = $region45
    $region44: #{tpu_custom_call.1} parent=1 // pred_region
      %79 = dma.done [#allocation9], 1024
    $region45: #{tpu_custom_call.1} parent=1 // pred_fallthru
      _
    %v81 = vld [vmem:[#allocation2] sm:$0xff]
    %v82 = vpack.c.bf16 %v81, %v81
    %v83 = vld [vmem:[#allocation5] sm:$0xf]
    %v84 = vld [vmem:[#allocation5 + $0x4] sm:$0xf]
    %v85 = vld [vmem:[#allocation5 + $0x8] sm:$0xf]
    %v86 = vld [vmem:[#allocation5 + $0xc] sm:$0xf]
    %v87 = vld [vmem:[%s2] sm:$0x1]
    %v89 = vlaneseq
    %v90 = vshrl.u32 %v89, 7
    %v91 = vsub.s32 0, %v90
    %v92 = vrot.slane %v87, %v91
    %v98 = vunpack.c.l.b16 %v83
    %v99 = vunpack.c.l.b16 %v84
    %v100 = vunpack.c.l.b16 %v85
    %v101 = vunpack.c.l.b16 %v86
    %v102 = vpack.c.b16 %v99, %v98
    %v103 = vpack.c.b16 %v101, %v100
    %vm106 = vcmask 261120
    %v108 = vsel %vm106, %v82, 0
    %110 = vmatprep.subr.bf16.mxu0 0
    %111 = vmatpush1.bf16.msra.mxu0 %v102
    %112 = vmatprep.subr.bf16.mxu0 0
    %113 = vmatpush1.bf16.msra.mxu0 %v103
    %114 = vmatprep.subr.bf16.mxu0 0
    %115 = vmatpush1.bf16.msra.mxu0 0
    %116 = vmatprep.subr.bf16.mxu0 0
    %117 = vmatpush1.bf16.msra.mxu0 0
    %118 = vmatprep.subr.bf16.mxu0 0
    %119 = vmatpush1.bf16.msra.mxu0 0
    %120 = vmatprep.subr.bf16.mxu0 0
    %121 = vmatpush1.bf16.msra.mxu0 0
    %122 = vmatprep.subr.bf16.mxu0 0
    %123 = vmatpush1.bf16.msra.mxu0 0
    %124 = vmatprep.subr.bf16.mxu0 0
    %125 = vmatpush1.bf16.msra.mxu0 0
    %126 = vmatprep.subr.bf16.mxu0 0
    %127 = vmatpush1.bf16.msra.mxu0 0
    %128 = vmatprep.subr.bf16.mxu0 0
    %129 = vmatpush1.bf16.msra.mxu0 0
    %130 = vmatprep.subr.bf16.mxu0 0
    %131 = vmatpush1.bf16.msra.mxu0 0
    %132 = vmatprep.subr.bf16.mxu0 0
    %133 = vmatpush1.bf16.msra.mxu0 0
    %134 = vmatprep.subr.bf16.mxu0 0
    %135 = vmatpush1.bf16.msra.mxu0 0
    %136 = vmatprep.subr.bf16.mxu0 0
    %137 = vmatpush1.bf16.msra.mxu0 0
    %138 = vmatprep.subr.bf16.mxu0 0
    %139 = vmatpush1.bf16.msra.mxu0 0
    %140 = vmatprep.subr.bf16.mxu0 0
    %141 = vmatpush1.bf16.msra.mxu0 0
    %142 = vmatprep.mubr.bf16.mxu0 0
    %143 = vmatmul.mubr.bf16.gmra.mrb[0].mxu0 %v108
    %v144 = vpop.f32.mrb[0].mxu0
    %v145 = vadd.f32 %v92, %v144
    %v146 = vpop.f32.mrb[0].mxu0
    %v147 = vpop.f32.mrb[0].mxu0
    %v148 = vpop.f32.mrb[0].mxu0
    %149 = vdwg.mxu0
    %150 = vmax.xlane.f32.xlu0 %v145
    %v151 = vpop.xlane.xlu0 %150
    %v152 = vsub.f32 %v145, %v151
    %v153 = vmul.f32 %v152, 1.442695
    %v154 = vpow.pop %v153
    %155 = vadd.xlane.f32.xlu0 %v154
    %v156 = vpop.xlane.xlu0 %155
    %v157 = vrcp.pop %v156
    %v158 = vmul.f32 %v154, %v157
    %v159 = vpack.c.bf16 %v158, %v158
    %v160 = vld [vmem:[#allocation7] sm:$0xf]
    %v161 = vld [vmem:[#allocation7 + $0x4] sm:$0xf]
    %v162 = vld [vmem:[#allocation7 + $0x8] sm:$0xf]
    %v163 = vld [vmem:[#allocation7 + $0xc] sm:$0xf]
    %v164 = vld [vmem:[#allocation7 + $0x10] sm:$0xf]
    %v165 = vld [vmem:[#allocation7 + $0x14] sm:$0xf]
    %v166 = vld [vmem:[#allocation7 + $0x18] sm:$0xf]
    %v167 = vld [vmem:[#allocation7 + $0x1c] sm:$0xf]
    %v168 = vld [vmem:[#allocation7 + $0x20] sm:$0xf]
    %v169 = vld [vmem:[#allocation7 + $0x24] sm:$0xf]
    %v170 = vld [vmem:[#allocation7 + $0x28] sm:$0xf]
    %v171 = vld [vmem:[#allocation7 + $0x2c] sm:$0xf]
    %v172 = vld [vmem:[#allocation7 + $0x30] sm:$0xf]
    %v173 = vld [vmem:[#allocation7 + $0x34] sm:$0xf]
    %v174 = vld [vmem:[#allocation7 + $0x38] sm:$0xf]
    %v175 = vld [vmem:[#allocation7 + $0x3c] sm:$0xf]
    %v176 = vld [vmem:[%s4] sm:$0x1]
    %v178 = vlaneseq
    %v179 = vshrl.u32 %v178, 7
    %v180 = vsub.s32 0, %v179
    %v181 = vrot.slane %v176, %v180
    %v199 = vunpack.c.l.b16 %v160
    %v200 = vunpack.c.l.b16 %v161
    %v201 = vunpack.c.l.b16 %v162
    %v202 = vunpack.c.l.b16 %v163
    %v203 = vunpack.c.l.b16 %v164
    %v204 = vunpack.c.l.b16 %v165
    %v205 = vunpack.c.l.b16 %v166
    %v206 = vunpack.c.l.b16 %v167
    %v207 = vunpack.c.l.b16 %v168
    %v208 = vunpack.c.l.b16 %v169
    %v209 = vunpack.c.l.b16 %v170
    %v210 = vunpack.c.l.b16 %v171
    %v211 = vunpack.c.l.b16 %v172
    %v212 = vunpack.c.l.b16 %v173
    %v213 = vunpack.c.l.b16 %v174
    %v214 = vunpack.c.l.b16 %v175
    %v215 = vpack.c.b16 %v200, %v199
    %v216 = vpack.c.b16 %v202, %v201
    %v217 = vpack.c.b16 %v204, %v203
    %v218 = vpack.c.b16 %v206, %v205
    %v219 = vpack.c.b16 %v208, %v207
    %v220 = vpack.c.b16 %v210, %v209
    %v221 = vpack.c.b16 %v212, %v211
    %v222 = vpack.c.b16 %v214, %v213
    %231 = vmatprep.subr.bf16.mxu0 0
    %232 = vmatpush1.bf16.msra.mxu0 %v215
    %233 = vmatprep.subr.bf16.mxu0 0
    %234 = vmatpush1.bf16.msra.mxu0 %v216
    %235 = vmatprep.subr.bf16.mxu0 0
    %236 = vmatpush1.bf16.msra.mxu0 %v217
    %237 = vmatprep.subr.bf16.mxu0 0
    %238 = vmatpush1.bf16.msra.mxu0 %v218
    %239 = vmatprep.subr.bf16.mxu0 0
    %240 = vmatpush1.bf16.msra.mxu0 %v219
    %241 = vmatprep.subr.bf16.mxu0 0
    %242 = vmatpush1.bf16.msra.mxu0 %v220
    %243 = vmatprep.subr.bf16.mxu0 0
    %244 = vmatpush1.bf16.msra.mxu0 %v221
    %245 = vmatprep.subr.bf16.mxu0 0
    %246 = vmatpush1.bf16.msra.mxu0 %v222
    %247 = vmatprep.subr.bf16.mxu0 0
    %248 = vmatpush1.bf16.msra.mxu0 0
    %249 = vmatprep.subr.bf16.mxu0 0
    %250 = vmatpush1.bf16.msra.mxu0 0
    %251 = vmatprep.subr.bf16.mxu0 0
    %252 = vmatpush1.bf16.msra.mxu0 0
    %253 = vmatprep.subr.bf16.mxu0 0
    %254 = vmatpush1.bf16.msra.mxu0 0
    %255 = vmatprep.subr.bf16.mxu0 0
    %256 = vmatpush1.bf16.msra.mxu0 0
    %257 = vmatprep.subr.bf16.mxu0 0
    %258 = vmatpush1.bf16.msra.mxu0 0
    %259 = vmatprep.subr.bf16.mxu0 0
    %260 = vmatpush1.bf16.msra.mxu0 0
    %261 = vmatprep.subr.bf16.mxu0 0
    %262 = vmatpush1.bf16.msra.mxu0 0
    %263 = vmatprep.mubr.bf16.mxu0 0
    %264 = vmatmul.mubr.bf16.gmra.mrb[0].mxu0 %v159
    %v265 = vpop.f32.mrb[0].mxu0
    %v266 = vadd.f32 %v181, %v265
    %v267 = vpop.f32.mrb[0].mxu0
    %v268 = vpop.f32.mrb[0].mxu0
    %v269 = vpop.f32.mrb[0].mxu0
    %270 = vdwg.mxu0
    %271 = vmax.xlane.f32.xlu0 %v266
    %v272 = vpop.xlane.xlu0 %271
    %v273 = vsub.f32 %v266, %v272
    %v274 = vmul.f32 %v273, 1.442695
    %v275 = vpow.pop %v274
    %276 = vadd.xlane.f32.xlu0 %v275
    %v277 = vpop.xlane.xlu0 %276
    %v278 = vrcp.pop %v277
    %v279 = vmul.f32 %v275, %v278
    %v280 = vpack.c.bf16 %v279, %v279
    %v281 = vld [vmem:[#allocation8] sm:$0xf]
    %v282 = vld [vmem:[#allocation8 + $0x4] sm:$0xf]
    %v283 = vld [vmem:[#allocation8 + $0x8] sm:$0xf]
    %v284 = vld [vmem:[#allocation8 + $0xc] sm:$0xf]
    %v285 = vld [vmem:[#allocation8 + $0x10] sm:$0xf]
    %v286 = vld [vmem:[#allocation8 + $0x14] sm:$0xf]
    %v287 = vld [vmem:[#allocation8 + $0x18] sm:$0xf]
    %v288 = vld [vmem:[#allocation8 + $0x1c] sm:$0xf]
    %v289 = vld [vmem:[#allocation8 + $0x20] sm:$0xf]
    %v290 = vld [vmem:[#allocation8 + $0x24] sm:$0xf]
    %v291 = vld [vmem:[#allocation8 + $0x28] sm:$0xf]
    %v292 = vld [vmem:[#allocation8 + $0x2c] sm:$0xf]
    %v293 = vld [vmem:[#allocation8 + $0x30] sm:$0xf]
    %v294 = vld [vmem:[#allocation8 + $0x34] sm:$0xf]
    %v295 = vld [vmem:[#allocation8 + $0x38] sm:$0xf]
    %v296 = vld [vmem:[#allocation8 + $0x3c] sm:$0xf]
    %v297 = vld [vmem:[%s6] sm:$0x1]
    %v299 = vlaneseq
    %v300 = vshrl.u32 %v299, 7
    %v301 = vsub.s32 0, %v300
    %v302 = vrot.slane %v297, %v301
    %v320 = vunpack.c.l.b16 %v281
    %v321 = vunpack.c.l.b16 %v282
    %v322 = vunpack.c.l.b16 %v283
    %v323 = vunpack.c.l.b16 %v284
    %v324 = vunpack.c.l.b16 %v285
    %v325 = vunpack.c.l.b16 %v286
    %v326 = vunpack.c.l.b16 %v287
    %v327 = vunpack.c.l.b16 %v288
    %v328 = vunpack.c.l.b16 %v289
    %v329 = vunpack.c.l.b16 %v290
    %v330 = vunpack.c.l.b16 %v291
    %v331 = vunpack.c.l.b16 %v292
    %v332 = vunpack.c.l.b16 %v293
    %v333 = vunpack.c.l.b16 %v294
    %v334 = vunpack.c.l.b16 %v295
    %v335 = vunpack.c.l.b16 %v296
    %v336 = vpack.c.b16 %v321, %v320
    %v337 = vpack.c.b16 %v323, %v322
    %v338 = vpack.c.b16 %v325, %v324
    %v339 = vpack.c.b16 %v327, %v326
    %v340 = vpack.c.b16 %v329, %v328
    %v341 = vpack.c.b16 %v331, %v330
    %v342 = vpack.c.b16 %v333, %v332
    %v343 = vpack.c.b16 %v335, %v334
    %352 = vmatprep.subr.bf16.mxu0 0
    %353 = vmatpush1.bf16.msra.mxu0 %v336
    %354 = vmatprep.subr.bf16.mxu0 0
    %355 = vmatpush1.bf16.msra.mxu0 %v337
    %356 = vmatprep.subr.bf16.mxu0 0
    %357 = vmatpush1.bf16.msra.mxu0 %v338
    %358 = vmatprep.subr.bf16.mxu0 0
    %359 = vmatpush1.bf16.msra.mxu0 %v339
    %360 = vmatprep.subr.bf16.mxu0 0
    %361 = vmatpush1.bf16.msra.mxu0 %v340
    %362 = vmatprep.subr.bf16.mxu0 0
    %363 = vmatpush1.bf16.msra.mxu0 %v341
    %364 = vmatprep.subr.bf16.mxu0 0
    %365 = vmatpush1.bf16.msra.mxu0 %v342
    %366 = vmatprep.subr.bf16.mxu0 0
    %367 = vmatpush1.bf16.msra.mxu0 %v343
    %368 = vmatprep.subr.bf16.mxu0 0
    %369 = vmatpush1.bf16.msra.mxu0 0
    %370 = vmatprep.subr.bf16.mxu0 0
    %371 = vmatpush1.bf16.msra.mxu0 0
    %372 = vmatprep.subr.bf16.mxu0 0
    %373 = vmatpush1.bf16.msra.mxu0 0
    %374 = vmatprep.subr.bf16.mxu0 0
    %375 = vmatpush1.bf16.msra.mxu0 0
    %376 = vmatprep.subr.bf16.mxu0 0
    %377 = vmatpush1.bf16.msra.mxu0 0
    %378 = vmatprep.subr.bf16.mxu0 0
    %379 = vmatpush1.bf16.msra.mxu0 0
    %380 = vmatprep.subr.bf16.mxu0 0
    %381 = vmatpush1.bf16.msra.mxu0 0
    %382 = vmatprep.subr.bf16.mxu0 0
    %383 = vmatpush1.bf16.msra.mxu0 0
    %384 = vmatprep.mubr.bf16.mxu0 0
    %385 = vmatmul.mubr.bf16.gmra.mrb[0].mxu0 %v280
    %v386 = vpop.f32.mrb[0].mxu0
    %v387 = vadd.f32 %v302, %v386
    %v388 = vpop.f32.mrb[0].mxu0
    %v389 = vpop.f32.mrb[0].mxu0
    %v390 = vpop.f32.mrb[0].mxu0
    %391 = vdwg.mxu0
    %v392 = vlaneseq
    %v393 = vand.u32 %v392, 127
    %vm394 = vcmp.lt.s32.totalorder %v393, 32
    %vm395 = vcmp.lt.s32.totalorder %v393, 64
    %v396 = vsel %vm395, %v266, %v387
    %v397 = vsel %vm394, %v145, %v396
    %398 = vst [vmem:[#allocation10] sm:$0xff] %v397
    // Predicated region
    $region46: #{tpu_custom_call.1} parent=1 // pred_check
      _
    $region47: #{tpu_custom_call.1} parent=1 // pred_check_branch
      %400 = sbr.rel (0) target = $region49
    $region48: #{tpu_custom_call.1} parent=1 // pred_region
      %s402 = ssub.s32 128, 128
      %403 = vsyncadd [#allocation4], %s402
      %s405 = sshll.u32 [#allocation10], 4
      %s406 = int_to_ptr.vmem [resolvable:$true] %s405
      %408 = dma.vmem_to_hbm [thread:$0]  %s406, 128, %s7, [#allocation4]
    $region49: #{tpu_custom_call.1} parent=1 // pred_fallthru
      _
    // Predicated region
    $region50: #{tpu_custom_call.1} parent=1 // pred_check
      _
    $region51: #{tpu_custom_call.1} parent=1 // pred_check_branch
      %410 = sbr.rel (0) target = $region53
    $region52: #{tpu_custom_call.1} parent=1 // pred_region
      %411 = dma.done [#allocation4], 128
    $region53: #{tpu_custom_call.1} parent=1 // pred_fallthru
      _
    %412 = vsyncpa [#allocation3], 1
    %413 = vsyncpa [#allocation6], 1
    %414 = vsyncpa [#allocation9], 1
    %415 = vsyncpa [#allocation4], 1

</llo_original>
